<compile_context>
chip_gen: v7x
topology: tpu7x:2x2x1
jax: 0.10.0
libtpu: 0.0.40
codegen_flags: <defaults>
</compile_context>

<pallas_src>
import jax
import jax.numpy as jnp
import numpy as np
from jax.experimental import pallas as pl
from jax.experimental.pallas import tpu as pltpu


def _full_spec(shape):
    """BlockSpec covering the full array in one (grid-less) block."""
    zeros = (0,) * len(shape)
    return pl.BlockSpec(shape, lambda: zeros)


# -----------------------------------------------------------------------------
# Fused kernel: [EEG encoder | fNIRS encoder] -> concat fusion -> Linear classifier
# Single program, no grid: whole batch + all params live in VMEM at once.
# -----------------------------------------------------------------------------
def _dual_modality_kernel(eeg_ref, fnirs_ref,
                          w1e_ref, sh1e_ref, w2e_ref, sh2e_ref,
                          w1f_ref, sh1f_ref, w2f_ref, sh2f_ref,
                          wce_ref, wcf_ref, bc_ref, out_ref):

    def conv_bn_relu(x, w_ref, sh_ref, L):
        # x: (R=B*L, Cin) matmul dtype; w_ref: (Cin, 3H) tap-packed with BN scale folded;
        # sh_ref: (1, H) f32 (conv bias + BN shift folded).  Conv1d(k=3, padding=1).
        R = x.shape[0]
        H = sh_ref.shape[-1]
        # ONE MXU matmul per layer for the whole batch; taps live in lane chunks of H.
        t = jnp.dot(x, w_ref[...], preferred_element_type=jnp.float32)      # (R, 3H) f32
        # Combine taps with sublane rolls (XLU).  Rolling the flat (B*L) axis may pull a
        # row from the neighbouring sample / wrap around, but those rows are exactly the
        # conv-padding boundaries and get masked to zero below.
        t_prev = pltpu.roll(t[:, :H], shift=1, axis=0)        # row r <- tap0 of row r-1
        t_curr = t[:, H:2 * H]                                 # row r <- tap1 of row r
        t_next = pltpu.roll(t[:, 2 * H:], shift=R - 1, axis=0)  # row r <- tap2 of row r+1
        pos = jax.lax.broadcasted_iota(jnp.int32, (R, H), 0) % L
        t_prev = jnp.where(pos == 0, 0.0, t_prev)
        t_next = jnp.where(pos == L - 1, 0.0, t_next)
        # Folded BN shift + ReLU (f32 elementwise on all generations).
        return jnp.maximum(t_prev + t_curr + t_next + sh_ref[...], 0.0)     # (R, H) f32

    def encode(x_ref, w1_ref, sh1_ref, w2_ref, sh2_ref):
        B, L, Cin = x_ref.shape
        x = x_ref[...].reshape(B * L, Cin)                     # flat batched rows
        h = conv_bn_relu(x, w1_ref, sh1_ref, L)                # (B*L, H) f32
        h = conv_bn_relu(h.astype(w2_ref.dtype), w2_ref, sh2_ref, L)
        H = h.shape[-1]
        # AdaptiveAvgPool1d(1): per-sample SUM over L (the 1/L is folded into the
        # classifier weights), features stay in VMEM.
        return jnp.sum(h.reshape(B, L, H), axis=1)             # (B, H) f32

    feat_e = encode(eeg_ref, w1e_ref, sh1e_ref, w2e_ref, sh2e_ref)
    feat_f = encode(fnirs_ref, w1f_ref, sh1f_ref, w2f_ref, sh2f_ref)

    # 'concat' fusion + Linear (dropout is identity in eval mode):
    #   [fe | ff] @ W^T + b  ==  fe @ We + ff @ Wf + b   (no in-kernel lane concat)
    out_ref[...] = (
        jnp.dot(feat_e.astype(wce_ref.dtype), wce_ref[...], preferred_element_type=jnp.float32)
        + jnp.dot(feat_f.astype(wcf_ref.dtype), wcf_ref[...], preferred_element_type=jnp.float32)
        + bc_ref[...])


# -----------------------------------------------------------------------------
# Wrapper: channels-last inputs, one grid-less pallas_call
# -----------------------------------------------------------------------------
def dual_modality_forward(eeg_blc, fnirs_blc, params):
    """eeg_blc: (B, L_eeg, C_eeg), fnirs_blc: (B, L_fnirs, C_fnirs), channels-last.

    `params` comes from prepare_params().  Returns f32 logits (B, num_classes).
    """
    dtype = params["w1e"].dtype
    eeg = eeg_blc.astype(dtype)
    fnirs = fnirs_blc.astype(dtype)
    B = eeg.shape[0]
    C = params["bc"].shape[-1]

    args = (eeg, fnirs,
            params["w1e"], params["sh1e"], params["w2e"], params["sh2e"],
            params["w1f"], params["sh1f"], params["w2f"], params["sh2f"],
            params["wce"], params["wcf"], params["bc"])

    return pl.pallas_call(
        _dual_modality_kernel,
        out_shape=jax.ShapeDtypeStruct((B, C), jnp.float32),
        in_specs=[_full_spec(a.shape) for a in args],
        out_specs=_full_spec((B, C)),
    )(*args)


# -----------------------------------------------------------------------------
# Parameter folding / packing (PyTorch layouts in, kernel layouts out)
# -----------------------------------------------------------------------------
def prepare_params(eeg_raw, fnirs_raw, cls_w, cls_b, eeg_len, fnirs_len,
                   matmul_dtype=jnp.float32, eps=1e-5):
    """Fold eval-mode BN + conv bias, pack the 3 conv taps along the output dim into a
    single (Cin, 3H) weight, pre-split the classifier weight and fold the avg-pool 1/L.

    cls_w: (num_classes, 2*H) PyTorch nn.Linear layout; cls_b: (num_classes,).
    """
    def fold(w, b, g, be, m, v):
        # BN(conv(x) + b) = conv_{w*s}(x) + (s*b + beta - s*mean),  s = gamma/sqrt(var+eps)
        s = g / jnp.sqrt(v + eps)                                   # (H,)
        H, Cin, K = w.shape
        wk = jnp.transpose(w, (1, 2, 0)) * s                        # (Cin, K, H), scale folded
        wk = wk.reshape(Cin, K * H).astype(matmul_dtype)            # tap k -> cols [k*H:(k+1)*H]
        sh = (s * b + be - s * m).reshape(1, H).astype(jnp.float32)
        return wk, sh

    def enc(p):
        w1, sh1 = fold(p["w1"], p["b1"], p["g1"], p["be1"], p["m1"], p["v1"])
        w2, sh2 = fold(p["w2"], p["b2"], p["g2"], p["be2"], p["m2"], p["v2"])
        return w1, sh1, w2, sh2

    w1e, sh1e, w2e, sh2e = enc(eeg_raw)
    w1f, sh1f, w2f, sh2f = enc(fnirs_raw)

    H = sh1e.shape[-1]
    wt = jnp.transpose(cls_w).astype(jnp.float32)                   # (2H, num_classes)
    wce = (wt[:H] / float(eeg_len)).astype(matmul_dtype)            # avg-pool 1/L folded in
    wcf = (wt[H:] / float(fnirs_len)).astype(matmul_dtype)
    bc = cls_b.reshape(1, -1).astype(jnp.float32)                   # accepts PyTorch (C,) bias
    return dict(w1e=w1e, sh1e=sh1e, w2e=w2e, sh2e=sh2e,
                w1f=w1f, sh1f=sh1f, w2f=w2f, sh2f=sh2f,
                wce=wce, wcf=wcf, bc=bc)


def make_raw_encoder_params(key, in_ch, hidden):
    """Raw PyTorch-layout encoder parameters (conv weights + eval-mode BN stats)."""
    ks = jax.random.split(key, 12)
    n = jax.random.normal
    return dict(
        w1=0.3 * n(ks[0], (hidden, in_ch, 3), jnp.float32),   # Conv1d: (out, in, k)
        b1=0.1 * n(ks[1], (hidden,), jnp.float32),
        g1=1.0 + 0.05 * n(ks[2], (hidden,), jnp.float32),
        be1=0.05 * n(ks[3], (hidden,), jnp.float32),
        m1=0.1 * n(ks[4], (hidden,), jnp.float32),
        v1=0.5 + jnp.abs(n(ks[5], (hidden,), jnp.float32)),
        w2=0.3 * n(ks[6], (hidden, hidden, 3), jnp.float32),
        b2=0.1 * n(ks[7], (hidden,), jnp.float32),
        g2=1.0 + 0.05 * n(ks[8], (hidden,), jnp.float32),
        be2=0.05 * n(ks[9], (hidden,), jnp.float32),
        m2=0.1 * n(ks[10], (hidden,), jnp.float32),
        v2=0.5 + jnp.abs(n(ks[11], (hidden,), jnp.float32)),
    )


# -----------------------------------------------------------------------------
# Pure-JAX reference (unfolded PyTorch eval-mode semantics, NCL input)
# -----------------------------------------------------------------------------
def _ref_encoder(x_ncl, p, eps=1e-5):
    x = jnp.transpose(x_ncl, (0, 2, 1))                                  # (B, L, C)

    def conv(inp, w_oik, b):
        L = inp.shape[1]
        xp = jnp.pad(inp, ((0, 0), (1, 1), (0, 0)))
        y = sum(jnp.einsum("blc,oc->blo", xp[:, k:k + L], w_oik[:, :, k]) for k in range(3))
        return y + b

    def bn(y, g, be, m, v):
        return (y - m) / jnp.sqrt(v + eps) * g + be

    h = jnp.maximum(bn(conv(x, p["w1"], p["b1"]), p["g1"], p["be1"], p["m1"], p["v1"]), 0.0)
    h = jnp.maximum(bn(conv(h, p["w2"], p["b2"]), p["g2"], p["be2"], p["m2"], p["v2"]), 0.0)
    return jnp.mean(h, axis=1)                                           # (B, H)


def _ref_forward(eeg_ncl, fnirs_ncl, eeg_raw, fnirs_raw, cls_w, cls_b):
    f = jnp.concatenate([_ref_encoder(eeg_ncl, eeg_raw),
                         _ref_encoder(fnirs_ncl, fnirs_raw)], axis=1)
    return f @ cls_w.T + cls_b                                           # nn.Linear: x W^T + b


if __name__ == "__main__":
    B = 2
    EEG_CH, EEG_LEN = 4, 16
    FNIRS_CH, FNIRS_LEN = 6, 8
    HIDDEN = 32
    NUM_CLASSES = 2

    root = jax.random.PRNGKey(0)
    k_eeg, k_fnirs, k_w, k_b, k_xe, k_xf = jax.random.split(root, 6)

    eeg_raw = make_raw_encoder_params(k_eeg, EEG_CH, HIDDEN)
    fnirs_raw = make_raw_encoder_params(k_fnirs, FNIRS_CH, HIDDEN)
    cls_w = 0.3 * jax.random.normal(k_w, (NUM_CLASSES, 2 * HIDDEN), jnp.float32)  # PyTorch layout
    cls_b = 0.1 * jax.random.normal(k_b, (NUM_CLASSES,), jnp.float32)

    # Inputs in the PyTorch module layout (B, C, L).
    eeg_ncl = jax.random.normal(k_xe, (B, EEG_CH, EEG_LEN), jnp.float32)
    fnirs_ncl = jax.random.normal(k_xf, (B, FNIRS_CH, FNIRS_LEN), jnp.float32)

    # One-time layout conversion to channels-last, OUTSIDE the forward (a real pipeline
    # keeps data channels-last so no per-forward HBM transpose is paid).
    eeg_blc = jnp.transpose(eeg_ncl, (0, 2, 1))
    fnirs_blc = jnp.transpose(fnirs_ncl, (0, 2, 1))

    ref = _ref_forward(eeg_ncl, fnirs_ncl, eeg_raw, fnirs_raw, cls_w, cls_b)

    # 1) float32 matmul operands: faithful to PyTorch eval-mode forward.
    p32 = prepare_params(eeg_raw, fnirs_raw, cls_w, cls_b, EEG_LEN, FNIRS_LEN, jnp.float32)
    out32 = jax.block_until_ready(dual_modality_forward(eeg_blc, fnirs_blc, p32))
    np.testing.assert_allclose(np.asarray(out32), np.asarray(ref), rtol=2e-4, atol=2e-4)

    # 2) bfloat16 matmul operands (perf variant for v6e/v7x; f32 shifts/accumulators).
    pbf = prepare_params(eeg_raw, fnirs_raw, cls_w, cls_b, EEG_LEN, FNIRS_LEN, jnp.bfloat16)
    outbf = jax.block_until_ready(dual_modality_forward(eeg_blc, fnirs_blc, pbf))
    np.testing.assert_allclose(np.asarray(outbf), np.asarray(ref), rtol=5e-2, atol=1e-1)

    assert out32.shape == (B, NUM_CLASSES)
    print("KERNEL_OK")
</pallas_src>

<mosaic_0001>
module attributes {stable_mosaic.version = 11 : i64} {
  func.func @_dual_modality_kernel(%arg0: memref<2x16x4xf32, #tpu.memory_space<vmem>>, %arg1: memref<2x8x6xf32, #tpu.memory_space<vmem>>, %arg2: memref<4x96xf32, #tpu.memory_space<vmem>>, %arg3: memref<1x32xf32, #tpu.memory_space<vmem>>, %arg4: memref<32x96xf32, #tpu.memory_space<vmem>>, %arg5: memref<1x32xf32, #tpu.memory_space<vmem>>, %arg6: memref<6x96xf32, #tpu.memory_space<vmem>>, %arg7: memref<1x32xf32, #tpu.memory_space<vmem>>, %arg8: memref<32x96xf32, #tpu.memory_space<vmem>>, %arg9: memref<1x32xf32, #tpu.memory_space<vmem>>, %arg10: memref<32x2xf32, #tpu.memory_space<vmem>>, %arg11: memref<32x2xf32, #tpu.memory_space<vmem>>, %arg12: memref<1x2xf32, #tpu.memory_space<vmem>>, %arg13: memref<2x2xf32, #tpu.memory_space<vmem>>) attributes {dimension_semantics = [], scalar_prefetch = 0 : i64, scratch_operands = 0 : i64, tpu.core_type = #tpu.core_type<tc>} {
    %c0 = arith.constant 0 : index
    %c0_0 = arith.constant 0 : index
    %c0_1 = arith.constant 0 : index
    %0 = vector.load %arg0[%c0, %c0_0, %c0_1] : memref<2x16x4xf32, #tpu.memory_space<vmem>>, vector<2x16x4xf32>
    %1 = vector.shape_cast %0 : vector<2x16x4xf32> to vector<32x4xf32>
    %c0_2 = arith.constant 0 : index
    %c0_3 = arith.constant 0 : index
    %2 = vector.load %arg2[%c0_2, %c0_3] : memref<4x96xf32, #tpu.memory_space<vmem>>, vector<4x96xf32>
    %cst = arith.constant dense<0.000000e+00> : vector<32x96xf32>
    %3 = tpu.matmul %1, %2, %cst {dimension_numbers = #tpu.dot_dimension_numbers<[1], [0], [0], [1], [0, 0, 1, 1], [], []>} : vector<32x4xf32>, vector<4x96xf32>, vector<32x96xf32> -> vector<32x96xf32>
    %4 = vector.extract_strided_slice %3 {offsets = [0, 0], sizes = [32, 32], strides = [1, 1]} : vector<32x96xf32> to vector<32x32xf32>
    %c1_i32 = arith.constant 1 : i32
    %5 = tpu.dynamic_rotate %4 by %c1_i32 dim 0 : vector<32x32xf32>, i32 -> vector<32x32xf32>
    %6 = vector.extract_strided_slice %3 {offsets = [0, 32], sizes = [32, 32], strides = [1, 1]} : vector<32x96xf32> to vector<32x32xf32>
    %7 = vector.extract_strided_slice %3 {offsets = [0, 64], sizes = [32, 32], strides = [1, 1]} : vector<32x96xf32> to vector<32x32xf32>
    %c31_i32 = arith.constant 31 : i32
    %8 = tpu.dynamic_rotate %7 by %c31_i32 dim 0 : vector<32x32xf32>, i32 -> vector<32x32xf32>
    %9 = tpu.iota {dimensions = array<i32: 0>} : vector<32x32xi32>
    %c16_i32 = arith.constant 16 : i32
    %c0_i32 = arith.constant 0 : i32
    %10 = arith.cmpi eq, %c16_i32, %c0_i32 : i32
    %c1_i32_4 = arith.constant 1 : i32
    %11 = arith.select %10, %c1_i32_4, %c16_i32 : i32
    %12 = vector.broadcast %11 : i32 to vector<32x32xi32>
    %13 = arith.remsi %9, %12 : vector<32x32xi32>
    %c0_i32_5 = arith.constant 0 : i32
    %14 = vector.broadcast %c0_i32_5 : i32 to vector<32x32xi32>
    %15 = arith.cmpi ne, %13, %14 : vector<32x32xi32>
    %c0_i32_6 = arith.constant 0 : i32
    %16 = vector.broadcast %c0_i32_6 : i32 to vector<32x32xi32>
    %17 = arith.cmpi slt, %13, %16 : vector<32x32xi32>
    %c0_i32_7 = arith.constant 0 : i32
    %18 = arith.cmpi slt, %11, %c0_i32_7 : i32
    %19 = vector.broadcast %18 : i1 to vector<32x32xi1>
    %20 = vector.broadcast %19 : vector<32x32xi1> to vector<32x32xi1>
    %21 = arith.xori %17, %20 : vector<32x32xi1>
    %22 = arith.andi %21, %15 : vector<32x32xi1>
    %23 = vector.broadcast %11 : i32 to vector<32x32xi32>
    %24 = arith.addi %13, %23 : vector<32x32xi32>
    %25 = arith.select %22, %24, %13 : vector<32x32xi1>, vector<32x32xi32>
    %c0_i32_8 = arith.constant 0 : i32
    %26 = vector.broadcast %c0_i32_8 : i32 to vector<32x32xi32>
    %27 = arith.cmpi eq, %25, %26 : vector<32x32xi32>
    %cst_9 = arith.constant 0.000000e+00 : f32
    %28 = vector.broadcast %cst_9 : f32 to vector<32x32xf32>
    %29 = arith.select %27, %28, %5 : vector<32x32xi1>, vector<32x32xf32>
    %c15_i32 = arith.constant 15 : i32
    %30 = vector.broadcast %c15_i32 : i32 to vector<32x32xi32>
    %31 = arith.cmpi eq, %25, %30 : vector<32x32xi32>
    %cst_10 = arith.constant 0.000000e+00 : f32
    %32 = vector.broadcast %cst_10 : f32 to vector<32x32xf32>
    %33 = arith.select %31, %32, %8 : vector<32x32xi1>, vector<32x32xf32>
    %34 = arith.addf %29, %6 : vector<32x32xf32>
    %35 = arith.addf %34, %33 : vector<32x32xf32>
    %c0_11 = arith.constant 0 : index
    %c0_12 = arith.constant 0 : index
    %36 = vector.load %arg3[%c0_11, %c0_12] : memref<1x32xf32, #tpu.memory_space<vmem>>, vector<1x32xf32>
    %37 = vector.broadcast %36 : vector<1x32xf32> to vector<32x32xf32>
    %38 = arith.addf %35, %37 : vector<32x32xf32>
    %cst_13 = arith.constant 0.000000e+00 : f32
    %39 = vector.broadcast %cst_13 : f32 to vector<32x32xf32>
    %40 = arith.maximumf %38, %39 : vector<32x32xf32>
    %c0_14 = arith.constant 0 : index
    %c0_15 = arith.constant 0 : index
    %41 = vector.load %arg4[%c0_14, %c0_15] : memref<32x96xf32, #tpu.memory_space<vmem>>, vector<32x96xf32>
    %cst_16 = arith.constant dense<0.000000e+00> : vector<32x96xf32>
    %42 = tpu.matmul %40, %41, %cst_16 {dimension_numbers = #tpu.dot_dimension_numbers<[1], [0], [0], [1], [0, 0, 1, 1], [], []>} : vector<32x32xf32>, vector<32x96xf32>, vector<32x96xf32> -> vector<32x96xf32>
    %43 = vector.extract_strided_slice %42 {offsets = [0, 0], sizes = [32, 32], strides = [1, 1]} : vector<32x96xf32> to vector<32x32xf32>
    %c1_i32_17 = arith.constant 1 : i32
    %44 = tpu.dynamic_rotate %43 by %c1_i32_17 dim 0 : vector<32x32xf32>, i32 -> vector<32x32xf32>
    %45 = vector.extract_strided_slice %42 {offsets = [0, 32], sizes = [32, 32], strides = [1, 1]} : vector<32x96xf32> to vector<32x32xf32>
    %46 = vector.extract_strided_slice %42 {offsets = [0, 64], sizes = [32, 32], strides = [1, 1]} : vector<32x96xf32> to vector<32x32xf32>
    %c31_i32_18 = arith.constant 31 : i32
    %47 = tpu.dynamic_rotate %46 by %c31_i32_18 dim 0 : vector<32x32xf32>, i32 -> vector<32x32xf32>
    %48 = tpu.iota {dimensions = array<i32: 0>} : vector<32x32xi32>
    %c16_i32_19 = arith.constant 16 : i32
    %c0_i32_20 = arith.constant 0 : i32
    %49 = arith.cmpi eq, %c16_i32_19, %c0_i32_20 : i32
    %c1_i32_21 = arith.constant 1 : i32
    %50 = arith.select %49, %c1_i32_21, %c16_i32_19 : i32
    %51 = vector.broadcast %50 : i32 to vector<32x32xi32>
    %52 = arith.remsi %48, %51 : vector<32x32xi32>
    %c0_i32_22 = arith.constant 0 : i32
    %53 = vector.broadcast %c0_i32_22 : i32 to vector<32x32xi32>
    %54 = arith.cmpi ne, %52, %53 : vector<32x32xi32>
    %c0_i32_23 = arith.constant 0 : i32
    %55 = vector.broadcast %c0_i32_23 : i32 to vector<32x32xi32>
    %56 = arith.cmpi slt, %52, %55 : vector<32x32xi32>
    %c0_i32_24 = arith.constant 0 : i32
    %57 = arith.cmpi slt, %50, %c0_i32_24 : i32
    %58 = vector.broadcast %57 : i1 to vector<32x32xi1>
    %59 = vector.broadcast %58 : vector<32x32xi1> to vector<32x32xi1>
    %60 = arith.xori %56, %59 : vector<32x32xi1>
    %61 = arith.andi %60, %54 : vector<32x32xi1>
    %62 = vector.broadcast %50 : i32 to vector<32x32xi32>
    %63 = arith.addi %52, %62 : vector<32x32xi32>
    %64 = arith.select %61, %63, %52 : vector<32x32xi1>, vector<32x32xi32>
    %c0_i32_25 = arith.constant 0 : i32
    %65 = vector.broadcast %c0_i32_25 : i32 to vector<32x32xi32>
    %66 = arith.cmpi eq, %64, %65 : vector<32x32xi32>
    %cst_26 = arith.constant 0.000000e+00 : f32
    %67 = vector.broadcast %cst_26 : f32 to vector<32x32xf32>
    %68 = arith.select %66, %67, %44 : vector<32x32xi1>, vector<32x32xf32>
    %c15_i32_27 = arith.constant 15 : i32
    %69 = vector.broadcast %c15_i32_27 : i32 to vector<32x32xi32>
    %70 = arith.cmpi eq, %64, %69 : vector<32x32xi32>
    %cst_28 = arith.constant 0.000000e+00 : f32
    %71 = vector.broadcast %cst_28 : f32 to vector<32x32xf32>
    %72 = arith.select %70, %71, %47 : vector<32x32xi1>, vector<32x32xf32>
    %73 = arith.addf %68, %45 : vector<32x32xf32>
    %74 = arith.addf %73, %72 : vector<32x32xf32>
    %c0_29 = arith.constant 0 : index
    %c0_30 = arith.constant 0 : index
    %75 = vector.load %arg5[%c0_29, %c0_30] : memref<1x32xf32, #tpu.memory_space<vmem>>, vector<1x32xf32>
    %76 = vector.broadcast %75 : vector<1x32xf32> to vector<32x32xf32>
    %77 = arith.addf %74, %76 : vector<32x32xf32>
    %cst_31 = arith.constant 0.000000e+00 : f32
    %78 = vector.broadcast %cst_31 : f32 to vector<32x32xf32>
    %79 = arith.maximumf %77, %78 : vector<32x32xf32>
    %80 = vector.shape_cast %79 : vector<32x32xf32> to vector<2x16x32xf32>
    %cst_32 = arith.constant dense<0.000000e+00> : vector<2x32xf32>
    %81 = vector.multi_reduction <add>, %80, %cst_32 [1] : vector<2x16x32xf32> to vector<2x32xf32>
    %c0_33 = arith.constant 0 : index
    %c0_34 = arith.constant 0 : index
    %c0_35 = arith.constant 0 : index
    %82 = vector.load %arg1[%c0_33, %c0_34, %c0_35] : memref<2x8x6xf32, #tpu.memory_space<vmem>>, vector<2x8x6xf32>
    %83 = vector.shape_cast %82 : vector<2x8x6xf32> to vector<16x6xf32>
    %c0_36 = arith.constant 0 : index
    %c0_37 = arith.constant 0 : index
    %84 = vector.load %arg6[%c0_36, %c0_37] : memref<6x96xf32, #tpu.memory_space<vmem>>, vector<6x96xf32>
    %cst_38 = arith.constant dense<0.000000e+00> : vector<16x96xf32>
    %85 = tpu.matmul %83, %84, %cst_38 {dimension_numbers = #tpu.dot_dimension_numbers<[1], [0], [0], [1], [0, 0, 1, 1], [], []>} : vector<16x6xf32>, vector<6x96xf32>, vector<16x96xf32> -> vector<16x96xf32>
    %86 = vector.extract_strided_slice %85 {offsets = [0, 0], sizes = [16, 32], strides = [1, 1]} : vector<16x96xf32> to vector<16x32xf32>
    %c1_i32_39 = arith.constant 1 : i32
    %87 = tpu.dynamic_rotate %86 by %c1_i32_39 dim 0 : vector<16x32xf32>, i32 -> vector<16x32xf32>
    %88 = vector.extract_strided_slice %85 {offsets = [0, 32], sizes = [16, 32], strides = [1, 1]} : vector<16x96xf32> to vector<16x32xf32>
    %89 = vector.extract_strided_slice %85 {offsets = [0, 64], sizes = [16, 32], strides = [1, 1]} : vector<16x96xf32> to vector<16x32xf32>
    %c15_i32_40 = arith.constant 15 : i32
    %90 = tpu.dynamic_rotate %89 by %c15_i32_40 dim 0 : vector<16x32xf32>, i32 -> vector<16x32xf32>
    %91 = tpu.iota {dimensions = array<i32: 0>} : vector<16x32xi32>
    %c8_i32 = arith.constant 8 : i32
    %c0_i32_41 = arith.constant 0 : i32
    %92 = arith.cmpi eq, %c8_i32, %c0_i32_41 : i32
    %c1_i32_42 = arith.constant 1 : i32
    %93 = arith.select %92, %c1_i32_42, %c8_i32 : i32
    %94 = vector.broadcast %93 : i32 to vector<16x32xi32>
    %95 = arith.remsi %91, %94 : vector<16x32xi32>
    %c0_i32_43 = arith.constant 0 : i32
    %96 = vector.broadcast %c0_i32_43 : i32 to vector<16x32xi32>
    %97 = arith.cmpi ne, %95, %96 : vector<16x32xi32>
    %c0_i32_44 = arith.constant 0 : i32
    %98 = vector.broadcast %c0_i32_44 : i32 to vector<16x32xi32>
    %99 = arith.cmpi slt, %95, %98 : vector<16x32xi32>
    %c0_i32_45 = arith.constant 0 : i32
    %100 = arith.cmpi slt, %93, %c0_i32_45 : i32
    %101 = vector.broadcast %100 : i1 to vector<16x32xi1>
    %102 = vector.broadcast %101 : vector<16x32xi1> to vector<16x32xi1>
    %103 = arith.xori %99, %102 : vector<16x32xi1>
    %104 = arith.andi %103, %97 : vector<16x32xi1>
    %105 = vector.broadcast %93 : i32 to vector<16x32xi32>
    %106 = arith.addi %95, %105 : vector<16x32xi32>
    %107 = arith.select %104, %106, %95 : vector<16x32xi1>, vector<16x32xi32>
    %c0_i32_46 = arith.constant 0 : i32
    %108 = vector.broadcast %c0_i32_46 : i32 to vector<16x32xi32>
    %109 = arith.cmpi eq, %107, %108 : vector<16x32xi32>
    %cst_47 = arith.constant 0.000000e+00 : f32
    %110 = vector.broadcast %cst_47 : f32 to vector<16x32xf32>
    %111 = arith.select %109, %110, %87 : vector<16x32xi1>, vector<16x32xf32>
    %c7_i32 = arith.constant 7 : i32
    %112 = vector.broadcast %c7_i32 : i32 to vector<16x32xi32>
    %113 = arith.cmpi eq, %107, %112 : vector<16x32xi32>
    %cst_48 = arith.constant 0.000000e+00 : f32
    %114 = vector.broadcast %cst_48 : f32 to vector<16x32xf32>
    %115 = arith.select %113, %114, %90 : vector<16x32xi1>, vector<16x32xf32>
    %116 = arith.addf %111, %88 : vector<16x32xf32>
    %117 = arith.addf %116, %115 : vector<16x32xf32>
    %c0_49 = arith.constant 0 : index
    %c0_50 = arith.constant 0 : index
    %118 = vector.load %arg7[%c0_49, %c0_50] : memref<1x32xf32, #tpu.memory_space<vmem>>, vector<1x32xf32>
    %119 = vector.broadcast %118 : vector<1x32xf32> to vector<16x32xf32>
    %120 = arith.addf %117, %119 : vector<16x32xf32>
    %cst_51 = arith.constant 0.000000e+00 : f32
    %121 = vector.broadcast %cst_51 : f32 to vector<16x32xf32>
    %122 = arith.maximumf %120, %121 : vector<16x32xf32>
    %c0_52 = arith.constant 0 : index
    %c0_53 = arith.constant 0 : index
    %123 = vector.load %arg8[%c0_52, %c0_53] : memref<32x96xf32, #tpu.memory_space<vmem>>, vector<32x96xf32>
    %cst_54 = arith.constant dense<0.000000e+00> : vector<16x96xf32>
    %124 = tpu.matmul %122, %123, %cst_54 {dimension_numbers = #tpu.dot_dimension_numbers<[1], [0], [0], [1], [0, 0, 1, 1], [], []>} : vector<16x32xf32>, vector<32x96xf32>, vector<16x96xf32> -> vector<16x96xf32>
    %125 = vector.extract_strided_slice %124 {offsets = [0, 0], sizes = [16, 32], strides = [1, 1]} : vector<16x96xf32> to vector<16x32xf32>
    %c1_i32_55 = arith.constant 1 : i32
    %126 = tpu.dynamic_rotate %125 by %c1_i32_55 dim 0 : vector<16x32xf32>, i32 -> vector<16x32xf32>
    %127 = vector.extract_strided_slice %124 {offsets = [0, 32], sizes = [16, 32], strides = [1, 1]} : vector<16x96xf32> to vector<16x32xf32>
    %128 = vector.extract_strided_slice %124 {offsets = [0, 64], sizes = [16, 32], strides = [1, 1]} : vector<16x96xf32> to vector<16x32xf32>
    %c15_i32_56 = arith.constant 15 : i32
    %129 = tpu.dynamic_rotate %128 by %c15_i32_56 dim 0 : vector<16x32xf32>, i32 -> vector<16x32xf32>
    %130 = tpu.iota {dimensions = array<i32: 0>} : vector<16x32xi32>
    %c8_i32_57 = arith.constant 8 : i32
    %c0_i32_58 = arith.constant 0 : i32
    %131 = arith.cmpi eq, %c8_i32_57, %c0_i32_58 : i32
    %c1_i32_59 = arith.constant 1 : i32
    %132 = arith.select %131, %c1_i32_59, %c8_i32_57 : i32
    %133 = vector.broadcast %132 : i32 to vector<16x32xi32>
    %134 = arith.remsi %130, %133 : vector<16x32xi32>
    %c0_i32_60 = arith.constant 0 : i32
    %135 = vector.broadcast %c0_i32_60 : i32 to vector<16x32xi32>
    %136 = arith.cmpi ne, %134, %135 : vector<16x32xi32>
    %c0_i32_61 = arith.constant 0 : i32
    %137 = vector.broadcast %c0_i32_61 : i32 to vector<16x32xi32>
    %138 = arith.cmpi slt, %134, %137 : vector<16x32xi32>
    %c0_i32_62 = arith.constant 0 : i32
    %139 = arith.cmpi slt, %132, %c0_i32_62 : i32
    %140 = vector.broadcast %139 : i1 to vector<16x32xi1>
    %141 = vector.broadcast %140 : vector<16x32xi1> to vector<16x32xi1>
    %142 = arith.xori %138, %141 : vector<16x32xi1>
    %143 = arith.andi %142, %136 : vector<16x32xi1>
    %144 = vector.broadcast %132 : i32 to vector<16x32xi32>
    %145 = arith.addi %134, %144 : vector<16x32xi32>
    %146 = arith.select %143, %145, %134 : vector<16x32xi1>, vector<16x32xi32>
    %c0_i32_63 = arith.constant 0 : i32
    %147 = vector.broadcast %c0_i32_63 : i32 to vector<16x32xi32>
    %148 = arith.cmpi eq, %146, %147 : vector<16x32xi32>
    %cst_64 = arith.constant 0.000000e+00 : f32
    %149 = vector.broadcast %cst_64 : f32 to vector<16x32xf32>
    %150 = arith.select %148, %149, %126 : vector<16x32xi1>, vector<16x32xf32>
    %c7_i32_65 = arith.constant 7 : i32
    %151 = vector.broadcast %c7_i32_65 : i32 to vector<16x32xi32>
    %152 = arith.cmpi eq, %146, %151 : vector<16x32xi32>
    %cst_66 = arith.constant 0.000000e+00 : f32
    %153 = vector.broadcast %cst_66 : f32 to vector<16x32xf32>
    %154 = arith.select %152, %153, %129 : vector<16x32xi1>, vector<16x32xf32>
    %155 = arith.addf %150, %127 : vector<16x32xf32>
    %156 = arith.addf %155, %154 : vector<16x32xf32>
    %c0_67 = arith.constant 0 : index
    %c0_68 = arith.constant 0 : index
    %157 = vector.load %arg9[%c0_67, %c0_68] : memref<1x32xf32, #tpu.memory_space<vmem>>, vector<1x32xf32>
    %158 = vector.broadcast %157 : vector<1x32xf32> to vector<16x32xf32>
    %159 = arith.addf %156, %158 : vector<16x32xf32>
    %cst_69 = arith.constant 0.000000e+00 : f32
    %160 = vector.broadcast %cst_69 : f32 to vector<16x32xf32>
    %161 = arith.maximumf %159, %160 : vector<16x32xf32>
    %162 = vector.shape_cast %161 : vector<16x32xf32> to vector<2x8x32xf32>
    %cst_70 = arith.constant dense<0.000000e+00> : vector<2x32xf32>
    %163 = vector.multi_reduction <add>, %162, %cst_70 [1] : vector<2x8x32xf32> to vector<2x32xf32>
    %c0_71 = arith.constant 0 : index
    %c0_72 = arith.constant 0 : index
    %164 = vector.load %arg10[%c0_71, %c0_72] : memref<32x2xf32, #tpu.memory_space<vmem>>, vector<32x2xf32>
    %cst_73 = arith.constant dense<0.000000e+00> : vector<2x2xf32>
    %165 = tpu.matmul %81, %164, %cst_73 {dimension_numbers = #tpu.dot_dimension_numbers<[1], [0], [0], [1], [0, 0, 1, 1], [], []>} : vector<2x32xf32>, vector<32x2xf32>, vector<2x2xf32> -> vector<2x2xf32>
    %c0_74 = arith.constant 0 : index
    %c0_75 = arith.constant 0 : index
    %166 = vector.load %arg11[%c0_74, %c0_75] : memref<32x2xf32, #tpu.memory_space<vmem>>, vector<32x2xf32>
    %cst_76 = arith.constant dense<0.000000e+00> : vector<2x2xf32>
    %167 = tpu.matmul %163, %166, %cst_76 {dimension_numbers = #tpu.dot_dimension_numbers<[1], [0], [0], [1], [0, 0, 1, 1], [], []>} : vector<2x32xf32>, vector<32x2xf32>, vector<2x2xf32> -> vector<2x2xf32>
    %168 = arith.addf %165, %167 : vector<2x2xf32>
    %c0_77 = arith.constant 0 : index
    %c0_78 = arith.constant 0 : index
    %169 = vector.load %arg12[%c0_77, %c0_78] : memref<1x2xf32, #tpu.memory_space<vmem>>, vector<1x2xf32>
    %170 = vector.broadcast %169 : vector<1x2xf32> to vector<2x2xf32>
    %171 = arith.addf %168, %170 : vector<2x2xf32>
    %c0_79 = arith.constant 0 : index
    %c0_80 = arith.constant 0 : index
    %172 = vector.load %arg13[%c0_79, %c0_80] : memref<2x2xf32, #tpu.memory_space<vmem>>, vector<2x2xf32>
    tpu.vector_store %arg13[%c0_79, %c0_80], %171 {strides = array<i32>} : memref<2x2xf32, #tpu.memory_space<vmem>>, vector<2x2xf32>,
    return
  }
}

</mosaic_0001>

<llo_original>
// kernel: tpu_custom_call.1
$region0: #{tpu_custom_call.1}
  #allocation0 [shape = 'u32[]', space=smem, size = 0x4, offset = 0x4, fixed_abs, tag = 'smem constant byte address 0x4 - core index']
  #allocation1 [shape = 'u32[144,128]{1,0:T(1,128)}', space=vmem, size = 0x12000, scoped, tag = 'internal scratch']
  %s0 = inlined_call_operand.vmem [shape: f32[2,16,4], index: 0, kind: input, shape index: {}]
  %s1 = inlined_call_operand.vmem [shape: f32[2,8,6], index: 1, kind: input, shape index: {}]
  %s2 = inlined_call_operand.vmem [shape: f32[4,96], index: 2, kind: input, shape index: {}]
  %s3 = inlined_call_operand.vmem [shape: f32[1,32], index: 3, kind: input, shape index: {}]
  %s4 = inlined_call_operand.vmem [shape: f32[32,96], index: 4, kind: input, shape index: {}]
  %s5 = inlined_call_operand.vmem [shape: f32[1,32], index: 5, kind: input, shape index: {}]
  %s6 = inlined_call_operand.vmem [shape: f32[6,96], index: 6, kind: input, shape index: {}]
  %s7 = inlined_call_operand.vmem [shape: f32[1,32], index: 7, kind: input, shape index: {}]
  %s8 = inlined_call_operand.vmem [shape: f32[32,96], index: 8, kind: input, shape index: {}]
  %s9 = inlined_call_operand.vmem [shape: f32[1,32], index: 9, kind: input, shape index: {}]
  %s10 = inlined_call_operand.vmem [shape: f32[32,2], index: 10, kind: input, shape index: {}]
  %s11 = inlined_call_operand.vmem [shape: f32[32,2], index: 11, kind: input, shape index: {}]
  %s12 = inlined_call_operand.vmem [shape: f32[1,2], index: 12, kind: input, shape index: {}]
  %s13 = inlined_call_operand.hbm [shape: f32[2,2], index: 13, kind: output, shape index: {}]
  %s14 = sld [smem:[#allocation0]]
  $region62: #{tpu_custom_call.1} parent=0
    _
  %s16 = ssub.s32 1, %s14
  %s17 = scalar_select 0, %s16, %s14
  $region1: #{tpu_custom_call.1} parent=0
    #allocation2 [shape = 'u8[1024]{0}', space=vmem, size = 0x400, scoped, tag = 'output window, operand 0, single buffered']
    #allocation3 [shape = 's32[1]{0}', space=sflag, size = 0x4, scoped, tag = 'scoped memory for tpu_custom_call.1']
    %18 = vsyncpa [#allocation3], 0
    // Predicated region
    $region2: #{tpu_custom_call.1} parent=1 // pred_check
      _
    $region3: #{tpu_custom_call.1} parent=1 // pred_check_branch
      %20 = sbr.rel (0) target = $region5
    $region4: #{tpu_custom_call.1} parent=1 // pred_region
      _
    $region5: #{tpu_custom_call.1} parent=1 // pred_fallthru
      _
    // Predicated region
    $region6: #{tpu_custom_call.1} parent=1 // pred_check
      _
    $region7: #{tpu_custom_call.1} parent=1 // pred_check_branch
      %22 = sbr.rel (0) target = $region9
    $region8: #{tpu_custom_call.1} parent=1 // pred_region
      _
    $region9: #{tpu_custom_call.1} parent=1 // pred_fallthru
      _
    // Predicated region
    $region10: #{tpu_custom_call.1} parent=1 // pred_check
      _
    $region11: #{tpu_custom_call.1} parent=1 // pred_check_branch
      %24 = sbr.rel (0) target = $region13
    $region12: #{tpu_custom_call.1} parent=1 // pred_region
      _
    $region13: #{tpu_custom_call.1} parent=1 // pred_fallthru
      _
    // Predicated region
    $region14: #{tpu_custom_call.1} parent=1 // pred_check
      _
    $region15: #{tpu_custom_call.1} parent=1 // pred_check_branch
      %26 = sbr.rel (0) target = $region17
    $region16: #{tpu_custom_call.1} parent=1 // pred_region
      _
    $region17: #{tpu_custom_call.1} parent=1 // pred_fallthru
      _
    // Predicated region
    $region18: #{tpu_custom_call.1} parent=1 // pred_check
      _
    $region19: #{tpu_custom_call.1} parent=1 // pred_check_branch
      %28 = sbr.rel (0) target = $region21
    $region20: #{tpu_custom_call.1} parent=1 // pred_region
      _
    $region21: #{tpu_custom_call.1} parent=1 // pred_fallthru
      _
    // Predicated region
    $region22: #{tpu_custom_call.1} parent=1 // pred_check
      _
    $region23: #{tpu_custom_call.1} parent=1 // pred_check_branch
      %30 = sbr.rel (0) target = $region25
    $region24: #{tpu_custom_call.1} parent=1 // pred_region
      _
    $region25: #{tpu_custom_call.1} parent=1 // pred_fallthru
      _
    // Predicated region
    $region26: #{tpu_custom_call.1} parent=1 // pred_check
      _
    $region27: #{tpu_custom_call.1} parent=1 // pred_check_branch
      %32 = sbr.rel (0) target = $region29
    $region28: #{tpu_custom_call.1} parent=1 // pred_region
      _
    $region29: #{tpu_custom_call.1} parent=1 // pred_fallthru
      _
    // Predicated region
    $region30: #{tpu_custom_call.1} parent=1 // pred_check
      _
    $region31: #{tpu_custom_call.1} parent=1 // pred_check_branch
      %34 = sbr.rel (0) target = $region33
    $region32: #{tpu_custom_call.1} parent=1 // pred_region
      _
    $region33: #{tpu_custom_call.1} parent=1 // pred_fallthru
      _
    // Predicated region
    $region34: #{tpu_custom_call.1} parent=1 // pred_check
      _
    $region35: #{tpu_custom_call.1} parent=1 // pred_check_branch
      %36 = sbr.rel (0) target = $region37
    $region36: #{tpu_custom_call.1} parent=1 // pred_region
      _
    $region37: #{tpu_custom_call.1} parent=1 // pred_fallthru
      _
    // Predicated region
    $region38: #{tpu_custom_call.1} parent=1 // pred_check
      _
    $region39: #{tpu_custom_call.1} parent=1 // pred_check_branch
      %38 = sbr.rel (0) target = $region41
    $region40: #{tpu_custom_call.1} parent=1 // pred_region
      _
    $region41: #{tpu_custom_call.1} parent=1 // pred_fallthru
      _
    // Predicated region
    $region42: #{tpu_custom_call.1} parent=1 // pred_check
      _
    $region43: #{tpu_custom_call.1} parent=1 // pred_check_branch
      %40 = sbr.rel (0) target = $region45
    $region44: #{tpu_custom_call.1} parent=1 // pred_region
      _
    $region45: #{tpu_custom_call.1} parent=1 // pred_fallthru
      _
    // Predicated region
    $region46: #{tpu_custom_call.1} parent=1 // pred_check
      _
    $region47: #{tpu_custom_call.1} parent=1 // pred_check_branch
      %42 = sbr.rel (0) target = $region49
    $region48: #{tpu_custom_call.1} parent=1 // pred_region
      _
    $region49: #{tpu_custom_call.1} parent=1 // pred_fallthru
      _
    // Predicated region
    $region50: #{tpu_custom_call.1} parent=1 // pred_check
      _
    $region51: #{tpu_custom_call.1} parent=1 // pred_check_branch
      %44 = sbr.rel (0) target = $region53
    $region52: #{tpu_custom_call.1} parent=1 // pred_region
      _
    $region53: #{tpu_custom_call.1} parent=1 // pred_fallthru
      _
    %v45 = vld [vmem:[%s0] sm:$0xff]
    %v46 = vld [vmem:[%s0 + $0x8] sm:$0xff]
    %v47 = vld [vmem:[%s0 + $0x10] sm:$0xff]
    %v48 = vld [vmem:[%s0 + $0x18] sm:$0xff]
    %v49 = vld [vmem:[%s2] sm:$0xf]
    %vm50 = vcmask 31744
    %v52 = vsel %vm50, %v45, 0
    %v55 = vsel %vm50, %v46, 0
    %v58 = vsel %vm50, %v47, 0
    %v61 = vsel %vm50, %v48, 0
    %vm63 = vcmask 1043456
    %v65 = vsel %vm63, %v49, 0
    %67 = vmatprep.subr.mxu0 0.0
    %68 = vmatpush1.msra.mxu0 %v65
    %69 = vmatprep.subr.mxu0 0.0
    %70 = vmatpush1.msra.mxu0 0.0
    %71 = vmatprep.subr.mxu0 0.0
    %72 = vmatpush1.msra.mxu0 0.0
    %73 = vmatprep.subr.mxu0 0.0
    %74 = vmatpush1.msra.mxu0 0.0
    %75 = vmatprep.subr.mxu0 0.0
    %76 = vmatpush1.msra.mxu0 0.0
    %77 = vmatprep.subr.mxu0 0.0
    %78 = vmatpush1.msra.mxu0 0.0
    %79 = vmatprep.subr.mxu0 0.0
    %80 = vmatpush1.msra.mxu0 0.0
    %81 = vmatprep.subr.mxu0 0.0
    %82 = vmatpush1.msra.mxu0 0.0
    %83 = vmatprep.subr.mxu0 0.0
    %84 = vmatpush1.msra.mxu0 0.0
    %85 = vmatprep.subr.mxu0 0.0
    %86 = vmatpush1.msra.mxu0 0.0
    %87 = vmatprep.subr.mxu0 0.0
    %88 = vmatpush1.msra.mxu0 0.0
    %89 = vmatprep.subr.mxu0 0.0
    %90 = vmatpush1.msra.mxu0 0.0
    %91 = vmatprep.subr.mxu0 0.0
    %92 = vmatpush1.msra.mxu0 0.0
    %93 = vmatprep.subr.mxu0 0.0
    %94 = vmatpush1.msra.mxu0 0.0
    %95 = vmatprep.subr.mxu0 0.0
    %96 = vmatpush1.msra.mxu0 0.0
    %97 = vmatprep.subr.mxu0 0.0
    %98 = vmatpush1.msra.mxu0 0.0
    %99 = vmatprep.subr.mxu0 0.0
    %100 = vmatpush1.msra.mxu0 0.0
    %101 = vmatprep.subr.mxu0 0.0
    %102 = vmatpush1.msra.mxu0 0.0
    %103 = vmatprep.subr.mxu0 0.0
    %104 = vmatpush1.msra.mxu0 0.0
    %105 = vmatprep.subr.mxu0 0.0
    %106 = vmatpush1.msra.mxu0 0.0
    %107 = vmatprep.subr.mxu0 0.0
    %108 = vmatpush1.msra.mxu0 0.0
    %109 = vmatprep.subr.mxu0 0.0
    %110 = vmatpush1.msra.mxu0 0.0
    %111 = vmatprep.subr.mxu0 0.0
    %112 = vmatpush1.msra.mxu0 0.0
    %113 = vmatprep.subr.mxu0 0.0
    %114 = vmatpush1.msra.mxu0 0.0
    %115 = vmatprep.subr.mxu0 0.0
    %116 = vmatpush1.msra.mxu0 0.0
    %117 = vmatprep.subr.mxu0 0.0
    %118 = vmatpush1.msra.mxu0 0.0
    %119 = vmatprep.subr.mxu0 0.0
    %120 = vmatpush1.msra.mxu0 0.0
    %121 = vmatprep.subr.mxu0 0.0
    %122 = vmatpush1.msra.mxu0 0.0
    %123 = vmatprep.subr.mxu0 0.0
    %124 = vmatpush1.msra.mxu0 0.0
    %125 = vmatprep.subr.mxu0 0.0
    %126 = vmatpush1.msra.mxu0 0.0
    %127 = vmatprep.subr.mxu0 0.0
    %128 = vmatpush1.msra.mxu0 0.0
    %129 = vmatprep.subr.mxu0 0.0
    %130 = vmatpush1.msra.mxu0 0.0
    %131 = vmatprep.mubr.f32.mxu0 0.0
    %132 = vmatmul.mubr.f32.gmra.mrb[0].mxu0 %v52
    %v133 = vpop.f32.mrb[0].mxu0
    %v134 = vadd.f32 0.0, %v133
    %v135 = vpop.f32.mrb[0].mxu0
    %136 = vmatprep.mubr.f32.mxu0 0.0
    %137 = vmatmul.mubr.f32.gmra.mrb[0].mxu0 %v55
    %v138 = vpop.f32.mrb[0].mxu0
    %v139 = vadd.f32 0.0, %v138
    %v140 = vpop.f32.mrb[0].mxu0
    %141 = vmatprep.mubr.f32.mxu0 0.0
    %142 = vmatmul.mubr.f32.gmra.mrb[0].mxu0 %v58
    %v143 = vpop.f32.mrb[0].mxu0
    %v144 = vadd.f32 0.0, %v143
    %v145 = vpop.f32.mrb[0].mxu0
    %146 = vmatprep.mubr.f32.mxu0 0.0
    %147 = vmatmul.mubr.f32.gmra.mrb[0].mxu0 %v61
    %v148 = vpop.f32.mrb[0].mxu0
    %v149 = vadd.f32 0.0, %v148
    %v150 = vpop.f32.mrb[0].mxu0
    %151 = vdwg.mxu0
    %v152 = vrot.slane %v134, 7
    %v153 = vrot.slane %v139, 7
    %v154 = vrot.slane %v144, 7
    %v155 = vrot.slane %v149, 7
    %v156 = vlaneseq
    %v157 = vshrl.u32 %v156, 7
    %vm158 = vcmp.lt.s32.totalorder %v157, 1
    %v159 = vsel %vm158, %v154, %v155
    %v160 = vsel %vm158, %v153, %v154
    %v161 = vsel %vm158, %v152, %v153
    %v162 = vsel %vm158, %v155, %v152
    %167 = vrot.lane.b32.xlu0 %v134, 64
    %v168 = vpop.permute.xlu0 %167
    %169 = vrot.lane.b32.xlu0 %v139, 64
    %v170 = vpop.permute.xlu0 %169
    %171 = vrot.lane.b32.xlu0 %v144, 64
    %v172 = vpop.permute.xlu0 %171
    %173 = vrot.lane.b32.xlu0 %v149, 64
    %v174 = vpop.permute.xlu0 %173
    %v179 = vrot.slane %v168, 1
    %v180 = vrot.slane %v170, 1
    %v181 = vrot.slane %v172, 1
    %v182 = vrot.slane %v174, 1
    %vm183 = vcmp.lt.s32.totalorder %v157, 7
    %v184 = vsel %vm183, %v181, %v182
    %v185 = vsel %vm183, %v180, %v181
    %v186 = vsel %vm183, %v179, %v180
    %v187 = vsel %vm183, %v182, %v179
    %v188 = vadd.s32 %v157, 8
    %v189 = vadd.s32 %v157, 16
    %v190 = vadd.s32 %v157, 24
    %vm191 = vcmp.lt.s32.totalorder %v157, 0
    %v192 = vsub.s32 0, %v157
    %v193 = vsel %vm191, %v192, %v157
    %v194 = vshrl.u32 %v193, 4
    %v195 = vand.u32 %v193, 15
    %v196 = vsub.s32 0, %v195
    %v197 = vsel %vm191, %v196, %v195
    %vm198 = vcmp.lt.s32.totalorder %v188, 0
    %v199 = vsub.s32 0, %v188
    %v200 = vsel %vm198, %v199, %v188
    %v201 = vshrl.u32 %v200, 4
    %v202 = vand.u32 %v200, 15
    %v203 = vsub.s32 0, %v202
    %v204 = vsel %vm198, %v203, %v202
    %vm205 = vcmp.lt.s32.totalorder %v189, 0
    %v206 = vsub.s32 0, %v189
    %v207 = vsel %vm205, %v206, %v189
    %v208 = vshrl.u32 %v207, 4
    %v209 = vand.u32 %v207, 15
    %v210 = vsub.s32 0, %v209
    %v211 = vsel %vm205, %v210, %v209
    %vm212 = vcmp.lt.s32.totalorder %v190, 0
    %v213 = vsub.s32 0, %v190
    %v214 = vsel %vm212, %v213, %v190
    %v215 = vshrl.u32 %v214, 4
    %v216 = vand.u32 %v214, 15
    %v217 = vsub.s32 0, %v216
    %v218 = vsel %vm212, %v217, %v216
    %vm219 = vcmp.ne.s32.totalorder %v197, 0
    %vm220 = vcmp.ne.s32.totalorder %v204, 0
    %vm221 = vcmp.ne.s32.totalorder %v211, 0
    %vm222 = vcmp.ne.s32.totalorder %v218, 0
    %vm223 = vcmp.lt.s32.totalorder %v197, 0
    %vm224 = vcmp.lt.s32.totalorder %v204, 0
    %vm225 = vcmp.lt.s32.totalorder %v211, 0
    %vm226 = vcmp.lt.s32.totalorder %v218, 0
    %vm227 = vmand %vm223, %vm219
    %vm228 = vmand %vm224, %vm220
    %vm229 = vmand %vm225, %vm221
    %vm230 = vmand %vm226, %vm222
    %v231 = vadd.s32 %v197, 16
    %v232 = vadd.s32 %v204, 16
    %v233 = vadd.s32 %v211, 16
    %v234 = vadd.s32 %v218, 16
    %v235 = vsel %vm227, %v231, %v197
    %v236 = vsel %vm228, %v232, %v204
    %v237 = vsel %vm229, %v233, %v211
    %v238 = vsel %vm230, %v234, %v218
    %vm239 = vcmp.eq.s32.totalorder %v235, 0
    %vm240 = vcmp.eq.s32.totalorder %v236, 0
    %vm241 = vcmp.eq.s32.totalorder %v237, 0
    %vm242 = vcmp.eq.s32.totalorder %v238, 0
    %v243 = vsel %vm239, 0.0, %v162
    %v244 = vsel %vm240, 0.0, %v161
    %v245 = vsel %vm241, 0.0, %v160
    %v246 = vsel %vm242, 0.0, %v159
    %vm247 = vcmp.eq.s32.totalorder %v235, 15
    %vm248 = vcmp.eq.s32.totalorder %v236, 15
    %vm249 = vcmp.eq.s32.totalorder %v237, 15
    %vm250 = vcmp.eq.s32.totalorder %v238, 15
    %v251 = vsel %vm247, 0.0, %v186
    %v252 = vsel %vm248, 0.0, %v185
    %v253 = vsel %vm249, 0.0, %v184
    %v254 = vsel %vm250, 0.0, %v187
    %255 = vrot.lane.b32.xlu0 %v134, 96
    %v256 = vpop.permute.xlu0 %255
    %257 = vrot.lane.b32.xlu0 %v139, 96
    %v258 = vpop.permute.xlu0 %257
    %259 = vrot.lane.b32.xlu0 %v144, 96
    %v260 = vpop.permute.xlu0 %259
    %261 = vrot.lane.b32.xlu0 %v149, 96
    %v262 = vpop.permute.xlu0 %261
    %v267 = vadd.f32 %v243, %v256
    %v268 = vadd.f32 %v244, %v258
    %v269 = vadd.f32 %v245, %v260
    %v270 = vadd.f32 %v246, %v262
    %v271 = vadd.f32 %v267, %v251
    %v272 = vadd.f32 %v268, %v252
    %v273 = vadd.f32 %v269, %v253
    %v274 = vadd.f32 %v270, %v254
    %v275 = vld [vmem:[%s3] sm:$0x1]
    %v277 = vlaneseq
    %v278 = vshrl.u32 %v277, 7
    %v279 = vsub.s32 0, %v278
    %v280 = vrot.slane %v275, %v279
    %v282 = vadd.f32 %v271, %v280
    %v283 = vadd.f32 %v272, %v280
    %v284 = vadd.f32 %v273, %v280
    %v285 = vadd.f32 %v274, %v280
    %v286 = vmax.f32 %v282, 0.0
    %v287 = vmax.f32 %v283, 0.0
    %v288 = vmax.f32 %v284, 0.0
    %v289 = vmax.f32 %v285, 0.0
    %v290 = vld [vmem:[%s4] sm:$0xff]
    %v291 = vld [vmem:[%s4 + $0x8] sm:$0xff]
    %v292 = vld [vmem:[%s4 + $0x10] sm:$0xff]
    %v293 = vld [vmem:[%s4 + $0x18] sm:$0xff]
    %vm294 = vcmask 261120
    %v296 = vsel %vm294, %v286, 0
    %v299 = vsel %vm294, %v287, 0
    %v302 = vsel %vm294, %v288, 0
    %v305 = vsel %vm294, %v289, 0
    %307 = vmatprep.subr.mxu0 0.0
    %308 = vmatpush1.msra.mxu0 %v290
    %309 = vmatprep.subr.mxu0 0.0
    %310 = vmatpush1.msra.mxu0 %v291
    %311 = vmatprep.subr.mxu0 0.0
    %312 = vmatpush1.msra.mxu0 %v292
    %313 = vmatprep.subr.mxu0 0.0
    %314 = vmatpush1.msra.mxu0 %v293
    %315 = vmatprep.subr.mxu0 0.0
    %316 = vmatpush1.msra.mxu0 0.0
    %317 = vmatprep.subr.mxu0 0.0
    %318 = vmatpush1.msra.mxu0 0.0
    %319 = vmatprep.subr.mxu0 0.0
    %320 = vmatpush1.msra.mxu0 0.0
    %321 = vmatprep.subr.mxu0 0.0
    %322 = vmatpush1.msra.mxu0 0.0
    %323 = vmatprep.subr.mxu0 0.0
    %324 = vmatpush1.msra.mxu0 0.0
    %325 = vmatprep.subr.mxu0 0.0
    %326 = vmatpush1.msra.mxu0 0.0
    %327 = vmatprep.subr.mxu0 0.0
    %328 = vmatpush1.msra.mxu0 0.0
    %329 = vmatprep.subr.mxu0 0.0
    %330 = vmatpush1.msra.mxu0 0.0
    %331 = vmatprep.subr.mxu0 0.0
    %332 = vmatpush1.msra.mxu0 0.0
    %333 = vmatprep.subr.mxu0 0.0
    %334 = vmatpush1.msra.mxu0 0.0
    %335 = vmatprep.subr.mxu0 0.0
    %336 = vmatpush1.msra.mxu0 0.0
    %337 = vmatprep.subr.mxu0 0.0
    %338 = vmatpush1.msra.mxu0 0.0
    %339 = vmatprep.subr.mxu0 0.0
    %340 = vmatpush1.msra.mxu0 0.0
    %341 = vmatprep.subr.mxu0 0.0
    %342 = vmatpush1.msra.mxu0 0.0
    %343 = vmatprep.subr.mxu0 0.0
    %344 = vmatpush1.msra.mxu0 0.0
    %345 = vmatprep.subr.mxu0 0.0
    %346 = vmatpush1.msra.mxu0 0.0
    %347 = vmatprep.subr.mxu0 0.0
    %348 = vmatpush1.msra.mxu0 0.0
    %349 = vmatprep.subr.mxu0 0.0
    %350 = vmatpush1.msra.mxu0 0.0
    %351 = vmatprep.subr.mxu0 0.0
    %352 = vmatpush1.msra.mxu0 0.0
    %353 = vmatprep.subr.mxu0 0.0
    %354 = vmatpush1.msra.mxu0 0.0
    %355 = vmatprep.subr.mxu0 0.0
    %356 = vmatpush1.msra.mxu0 0.0
    %357 = vmatprep.subr.mxu0 0.0
    %358 = vmatpush1.msra.mxu0 0.0
    %359 = vmatprep.subr.mxu0 0.0
    %360 = vmatpush1.msra.mxu0 0.0
    %361 = vmatprep.subr.mxu0 0.0
    %362 = vmatpush1.msra.mxu0 0.0
    %363 = vmatprep.subr.mxu0 0.0
    %364 = vmatpush1.msra.mxu0 0.0
    %365 = vmatprep.subr.mxu0 0.0
    %366 = vmatpush1.msra.mxu0 0.0
    %367 = vmatprep.subr.mxu0 0.0
    %368 = vmatpush1.msra.mxu0 0.0
    %369 = vmatprep.subr.mxu0 0.0
    %370 = vmatpush1.msra.mxu0 0.0
    %371 = vmatprep.mubr.f32.mxu0 0.0
    %372 = vmatmul.mubr.f32.gmra.mrb[0].mxu0 %v296
    %v373 = vpop.f32.mrb[0].mxu0
    %v374 = vadd.f32 0.0, %v373
    %v375 = vpop.f32.mrb[0].mxu0
    %376 = vmatprep.mubr.f32.mxu0 0.0
    %377 = vmatmul.mubr.f32.gmra.mrb[0].mxu0 %v299
    %v378 = vpop.f32.mrb[0].mxu0
    %v379 = vadd.f32 0.0, %v378
    %v380 = vpop.f32.mrb[0].mxu0
    %381 = vmatprep.mubr.f32.mxu0 0.0
    %382 = vmatmul.mubr.f32.gmra.mrb[0].mxu0 %v302
    %v383 = vpop.f32.mrb[0].mxu0
    %v384 = vadd.f32 0.0, %v383
    %v385 = vpop.f32.mrb[0].mxu0
    %386 = vmatprep.mubr.f32.mxu0 0.0
    %387 = vmatmul.mubr.f32.gmra.mrb[0].mxu0 %v305
    %v388 = vpop.f32.mrb[0].mxu0
    %v389 = vadd.f32 0.0, %v388
    %v390 = vpop.f32.mrb[0].mxu0
    %391 = vdwg.mxu0
    %v392 = vrot.slane %v374, 7
    %v393 = vrot.slane %v379, 7
    %v394 = vrot.slane %v384, 7
    %v395 = vrot.slane %v389, 7
    %v396 = vsel %vm158, %v394, %v395
    %v397 = vsel %vm158, %v393, %v394
    %v398 = vsel %vm158, %v392, %v393
    %v399 = vsel %vm158, %v395, %v392
    %404 = vrot.lane.b32.xlu0 %v374, 64
    %v405 = vpop.permute.xlu0 %404
    %406 = vrot.lane.b32.xlu0 %v379, 64
    %v407 = vpop.permute.xlu0 %406
    %408 = vrot.lane.b32.xlu0 %v384, 64
    %v409 = vpop.permute.xlu0 %408
    %410 = vrot.lane.b32.xlu0 %v389, 64
    %v411 = vpop.permute.xlu0 %410
    %v416 = vrot.slane %v405, 1
    %v417 = vrot.slane %v407, 1
    %v418 = vrot.slane %v409, 1
    %v419 = vrot.slane %v411, 1
    %v420 = vsel %vm183, %v418, %v419
    %v421 = vsel %vm183, %v417, %v418
    %v422 = vsel %vm183, %v416, %v417
    %v423 = vsel %vm183, %v419, %v416
    %v424 = vsel %vm239, 0.0, %v399
    %v425 = vsel %vm240, 0.0, %v398
    %v426 = vsel %vm241, 0.0, %v397
    %v427 = vsel %vm242, 0.0, %v396
    %v428 = vsel %vm247, 0.0, %v422
    %v429 = vsel %vm248, 0.0, %v421
    %v430 = vsel %vm249, 0.0, %v420
    %v431 = vsel %vm250, 0.0, %v423
    %432 = vrot.lane.b32.xlu0 %v374, 96
    %v433 = vpop.permute.xlu0 %432
    %434 = vrot.lane.b32.xlu0 %v379, 96
    %v435 = vpop.permute.xlu0 %434
    %436 = vrot.lane.b32.xlu0 %v384, 96
    %v437 = vpop.permute.xlu0 %436
    %438 = vrot.lane.b32.xlu0 %v389, 96
    %v439 = vpop.permute.xlu0 %438
    %v444 = vadd.f32 %v424, %v433
    %v445 = vadd.f32 %v425, %v435
    %v446 = vadd.f32 %v426, %v437
    %v447 = vadd.f32 %v427, %v439
    %v448 = vadd.f32 %v444, %v428
    %v449 = vadd.f32 %v445, %v429
    %v450 = vadd.f32 %v446, %v430
    %v451 = vadd.f32 %v447, %v431
    %v452 = vld [vmem:[%s5] sm:$0x1]
    %v454 = vlaneseq
    %v455 = vshrl.u32 %v454, 7
    %v456 = vsub.s32 0, %v455
    %v457 = vrot.slane %v452, %v456
    %v459 = vadd.f32 %v448, %v457
    %v460 = vadd.f32 %v449, %v457
    %v461 = vadd.f32 %v450, %v457
    %v462 = vadd.f32 %v451, %v457
    %v463 = vmax.f32 %v459, 0.0
    %v464 = vmax.f32 %v460, 0.0
    %v465 = vmax.f32 %v461, 0.0
    %v466 = vmax.f32 %v462, 0.0
    %v467 = vsel %vm294, %v463, 0.0
    %v468 = vsel %vm294, %v464, 0.0
    %v469 = vadd.f32 %v467, %v468
    %v470 = vrot.slane %v469, 4
    %v471 = vadd.f32 %v469, %v470
    %v472 = vrot.slane %v471, 2
    %v473 = vadd.f32 %v471, %v472
    %v474 = vrot.slane %v473, 1
    %v475 = vadd.f32 %v473, %v474
    %v476 = vsel %vm294, %v465, 0.0
    %v477 = vsel %vm294, %v466, 0.0
    %v478 = vadd.f32 %v476, %v477
    %v479 = vrot.slane %v478, 4
    %v480 = vadd.f32 %v478, %v479
    %v481 = vrot.slane %v480, 2
    %v482 = vadd.f32 %v480, %v481
    %v483 = vrot.slane %v482, 1
    %v484 = vadd.f32 %v482, %v483
    %v485 = vld [vmem:[%s1] sm:$0xff]
    %v486 = vld [vmem:[%s1 + $0x8] sm:$0xff]
    %v487 = vld [vmem:[%s6] sm:$0x3f]
    %vm488 = vcmask 48128
    %v490 = vsel %vm488, %v485, 0
    %v493 = vsel %vm488, %v486, 0
    %vm495 = vcmask 1045504
    %v497 = vsel %vm495, %v487, 0
    %499 = vmatprep.subr.mxu0 0.0
    %500 = vmatpush1.msra.mxu0 %v497
    %501 = vmatprep.subr.mxu0 0.0
    %502 = vmatpush1.msra.mxu0 0.0
    %503 = vmatprep.subr.mxu0 0.0
    %504 = vmatpush1.msra.mxu0 0.0
    %505 = vmatprep.subr.mxu0 0.0
    %506 = vmatpush1.msra.mxu0 0.0
    %507 = vmatprep.subr.mxu0 0.0
    %508 = vmatpush1.msra.mxu0 0.0
    %509 = vmatprep.subr.mxu0 0.0
    %510 = vmatpush1.msra.mxu0 0.0
    %511 = vmatprep.subr.mxu0 0.0
    %512 = vmatpush1.msra.mxu0 0.0
    %513 = vmatprep.subr.mxu0 0.0
    %514 = vmatpush1.msra.mxu0 0.0
    %515 = vmatprep.subr.mxu0 0.0
    %516 = vmatpush1.msra.mxu0 0.0
    %517 = vmatprep.subr.mxu0 0.0
    %518 = vmatpush1.msra.mxu0 0.0
    %519 = vmatprep.subr.mxu0 0.0
    %520 = vmatpush1.msra.mxu0 0.0
    %521 = vmatprep.subr.mxu0 0.0
    %522 = vmatpush1.msra.mxu0 0.0
    %523 = vmatprep.subr.mxu0 0.0
    %524 = vmatpush1.msra.mxu0 0.0
    %525 = vmatprep.subr.mxu0 0.0
    %526 = vmatpush1.msra.mxu0 0.0
    %527 = vmatprep.subr.mxu0 0.0
    %528 = vmatpush1.msra.mxu0 0.0
    %529 = vmatprep.subr.mxu0 0.0
    %530 = vmatpush1.msra.mxu0 0.0
    %531 = vmatprep.subr.mxu0 0.0
    %532 = vmatpush1.msra.mxu0 0.0
    %533 = vmatprep.subr.mxu0 0.0
    %534 = vmatpush1.msra.mxu0 0.0
    %535 = vmatprep.subr.mxu0 0.0
    %536 = vmatpush1.msra.mxu0 0.0
    %537 = vmatprep.subr.mxu0 0.0
    %538 = vmatpush1.msra.mxu0 0.0
    %539 = vmatprep.subr.mxu0 0.0
    %540 = vmatpush1.msra.mxu0 0.0
    %541 = vmatprep.subr.mxu0 0.0
    %542 = vmatpush1.msra.mxu0 0.0
    %543 = vmatprep.subr.mxu0 0.0
    %544 = vmatpush1.msra.mxu0 0.0
    %545 = vmatprep.subr.mxu0 0.0
    %546 = vmatpush1.msra.mxu0 0.0
    %547 = vmatprep.subr.mxu0 0.0
    %548 = vmatpush1.msra.mxu0 0.0
    %549 = vmatprep.subr.mxu0 0.0
    %550 = vmatpush1.msra.mxu0 0.0
    %551 = vmatprep.subr.mxu0 0.0
    %552 = vmatpush1.msra.mxu0 0.0
    %553 = vmatprep.subr.mxu0 0.0
    %554 = vmatpush1.msra.mxu0 0.0
    %555 = vmatprep.subr.mxu0 0.0
    %556 = vmatpush1.msra.mxu0 0.0
    %557 = vmatprep.subr.mxu0 0.0
    %558 = vmatpush1.msra.mxu0 0.0
    %559 = vmatprep.subr.mxu0 0.0
    %560 = vmatpush1.msra.mxu0 0.0
    %561 = vmatprep.subr.mxu0 0.0
    %562 = vmatpush1.msra.mxu0 0.0
    %563 = vmatprep.mubr.f32.mxu0 0.0
    %564 = vmatmul.mubr.f32.gmra.mrb[0].mxu0 %v490
    %v565 = vpop.f32.mrb[0].mxu0
    %v566 = vadd.f32 0.0, %v565
    %v567 = vpop.f32.mrb[0].mxu0
    %568 = vmatprep.mubr.f32.mxu0 0.0
    %569 = vmatmul.mubr.f32.gmra.mrb[0].mxu0 %v493
    %v570 = vpop.f32.mrb[0].mxu0
    %v571 = vadd.f32 0.0, %v570
    %v572 = vpop.f32.mrb[0].mxu0
    %573 = vdwg.mxu0
    %v574 = vrot.slane %v566, 7
    %v575 = vrot.slane %v571, 7
    %v576 = vsel %vm158, %v574, %v575
    %v577 = vsel %vm158, %v575, %v574
    %580 = vrot.lane.b32.xlu0 %v566, 64
    %v581 = vpop.permute.xlu0 %580
    %582 = vrot.lane.b32.xlu0 %v571, 64
    %v583 = vpop.permute.xlu0 %582
    %v586 = vrot.slane %v581, 1
    %v587 = vrot.slane %v583, 1
    %v588 = vsel %vm183, %v586, %v587
    %v589 = vsel %vm183, %v587, %v586
    %vm590 = vcmp.lt.s32.totalorder %v157, 0
    %v591 = vsub.s32 0, %v157
    %v592 = vsel %vm590, %v591, %v157
    %v593 = vshrl.u32 %v592, 3
    %v594 = vand.u32 %v592, 7
    %v595 = vsub.s32 0, %v594
    %v596 = vsel %vm590, %v595, %v594
    %vm597 = vcmp.lt.s32.totalorder %v188, 0
    %v598 = vsub.s32 0, %v188
    %v599 = vsel %vm597, %v598, %v188
    %v600 = vshrl.u32 %v599, 3
    %v601 = vand.u32 %v599, 7
    %v602 = vsub.s32 0, %v601
    %v603 = vsel %vm597, %v602, %v601
    %vm604 = vcmp.ne.s32.totalorder %v596, 0
    %vm605 = vcmp.ne.s32.totalorder %v603, 0
    %vm606 = vcmp.lt.s32.totalorder %v596, 0
    %vm607 = vcmp.lt.s32.totalorder %v603, 0
    %vm608 = vmand %vm606, %vm604
    %vm609 = vmand %vm607, %vm605
    %v610 = vadd.s32 %v596, 8
    %v611 = vadd.s32 %v603, 8
    %v612 = vsel %vm608, %v610, %v596
    %v613 = vsel %vm609, %v611, %v603
    %vm614 = vcmp.eq.s32.totalorder %v612, 0
    %vm615 = vcmp.eq.s32.totalorder %v613, 0
    %v616 = vsel %vm614, 0.0, %v577
    %v617 = vsel %vm615, 0.0, %v576
    %vm618 = vcmp.eq.s32.totalorder %v612, 7
    %vm619 = vcmp.eq.s32.totalorder %v613, 7
    %v620 = vsel %vm618, 0.0, %v588
    %v621 = vsel %vm619, 0.0, %v589
    %622 = vrot.lane.b32.xlu0 %v566, 96
    %v623 = vpop.permute.xlu0 %622
    %624 = vrot.lane.b32.xlu0 %v571, 96
    %v625 = vpop.permute.xlu0 %624
    %v628 = vadd.f32 %v616, %v623
    %v629 = vadd.f32 %v617, %v625
    %v630 = vadd.f32 %v628, %v620
    %v631 = vadd.f32 %v629, %v621
    %v632 = vld [vmem:[%s7] sm:$0x1]
    %v634 = vlaneseq
    %v635 = vshrl.u32 %v634, 7
    %v636 = vsub.s32 0, %v635
    %v637 = vrot.slane %v632, %v636
    %v639 = vadd.f32 %v630, %v637
    %v640 = vadd.f32 %v631, %v637
    %v641 = vmax.f32 %v639, 0.0
    %v642 = vmax.f32 %v640, 0.0
    %v643 = vld [vmem:[%s8] sm:$0xff]
    %v644 = vld [vmem:[%s8 + $0x8] sm:$0xff]
    %v645 = vld [vmem:[%s8 + $0x10] sm:$0xff]
    %v646 = vld [vmem:[%s8 + $0x18] sm:$0xff]
    %v648 = vsel %vm294, %v641, 0
    %v651 = vsel %vm294, %v642, 0
    %653 = vmatprep.subr.mxu0 0.0
    %654 = vmatpush1.msra.mxu0 %v643
    %655 = vmatprep.subr.mxu0 0.0
    %656 = vmatpush1.msra.mxu0 %v644
    %657 = vmatprep.subr.mxu0 0.0
    %658 = vmatpush1.msra.mxu0 %v645
    %659 = vmatprep.subr.mxu0 0.0
    %660 = vmatpush1.msra.mxu0 %v646
    %661 = vmatprep.subr.mxu0 0.0
    %662 = vmatpush1.msra.mxu0 0.0
    %663 = vmatprep.subr.mxu0 0.0
    %664 = vmatpush1.msra.mxu0 0.0
    %665 = vmatprep.subr.mxu0 0.0
    %666 = vmatpush1.msra.mxu0 0.0
    %667 = vmatprep.subr.mxu0 0.0
    %668 = vmatpush1.msra.mxu0 0.0
    %669 = vmatprep.subr.mxu0 0.0
    %670 = vmatpush1.msra.mxu0 0.0
    %671 = vmatprep.subr.mxu0 0.0
    %672 = vmatpush1.msra.mxu0 0.0
    %673 = vmatprep.subr.mxu0 0.0
    %674 = vmatpush1.msra.mxu0 0.0
    %675 = vmatprep.subr.mxu0 0.0
    %676 = vmatpush1.msra.mxu0 0.0
    %677 = vmatprep.subr.mxu0 0.0
    %678 = vmatpush1.msra.mxu0 0.0
    %679 = vmatprep.subr.mxu0 0.0
    %680 = vmatpush1.msra.mxu0 0.0
    %681 = vmatprep.subr.mxu0 0.0
    %682 = vmatpush1.msra.mxu0 0.0
    %683 = vmatprep.subr.mxu0 0.0
    %684 = vmatpush1.msra.mxu0 0.0
    %685 = vmatprep.subr.mxu0 0.0
    %686 = vmatpush1.msra.mxu0 0.0
    %687 = vmatprep.subr.mxu0 0.0
    %688 = vmatpush1.msra.mxu0 0.0
    %689 = vmatprep.subr.mxu0 0.0
    %690 = vmatpush1.msra.mxu0 0.0
    %691 = vmatprep.subr.mxu0 0.0
    %692 = vmatpush1.msra.mxu0 0.0
    %693 = vmatprep.subr.mxu0 0.0
    %694 = vmatpush1.msra.mxu0 0.0
    %695 = vmatprep.subr.mxu0 0.0
    %696 = vmatpush1.msra.mxu0 0.0
    %697 = vmatprep.subr.mxu0 0.0
    %698 = vmatpush1.msra.mxu0 0.0
    %699 = vmatprep.subr.mxu0 0.0
    %700 = vmatpush1.msra.mxu0 0.0
    %701 = vmatprep.subr.mxu0 0.0
    %702 = vmatpush1.msra.mxu0 0.0
    %703 = vmatprep.subr.mxu0 0.0
    %704 = vmatpush1.msra.mxu0 0.0
    %705 = vmatprep.subr.mxu0 0.0
    %706 = vmatpush1.msra.mxu0 0.0
    %707 = vmatprep.subr.mxu0 0.0
    %708 = vmatpush1.msra.mxu0 0.0
    %709 = vmatprep.subr.mxu0 0.0
    %710 = vmatpush1.msra.mxu0 0.0
    %711 = vmatprep.subr.mxu0 0.0
    %712 = vmatpush1.msra.mxu0 0.0
    %713 = vmatprep.subr.mxu0 0.0
    %714 = vmatpush1.msra.mxu0 0.0
    %715 = vmatprep.subr.mxu0 0.0
    %716 = vmatpush1.msra.mxu0 0.0
    %717 = vmatprep.mubr.f32.mxu0 0.0
    %718 = vmatmul.mubr.f32.gmra.mrb[0].mxu0 %v648
    %v719 = vpop.f32.mrb[0].mxu0
    %v720 = vadd.f32 0.0, %v719
    %v721 = vpop.f32.mrb[0].mxu0
    %722 = vmatprep.mubr.f32.mxu0 0.0
    %723 = vmatmul.mubr.f32.gmra.mrb[0].mxu0 %v651
    %v724 = vpop.f32.mrb[0].mxu0
    %v725 = vadd.f32 0.0, %v724
    %v726 = vpop.f32.mrb[0].mxu0
    %727 = vdwg.mxu0
    %v728 = vrot.slane %v720, 7
    %v729 = vrot.slane %v725, 7
    %v730 = vsel %vm158, %v728, %v729
    %v731 = vsel %vm158, %v729, %v728
    %734 = vrot.lane.b32.xlu0 %v720, 64
    %v735 = vpop.permute.xlu0 %734
    %736 = vrot.lane.b32.xlu0 %v725, 64
    %v737 = vpop.permute.xlu0 %736
    %v740 = vrot.slane %v735, 1
    %v741 = vrot.slane %v737, 1
    %v742 = vsel %vm183, %v740, %v741
    %v743 = vsel %vm183, %v741, %v740
    %v744 = vsel %vm614, 0.0, %v731
    %v745 = vsel %vm615, 0.0, %v730
    %v746 = vsel %vm618, 0.0, %v742
    %v747 = vsel %vm619, 0.0, %v743
    %748 = vrot.lane.b32.xlu0 %v720, 96
    %v749 = vpop.permute.xlu0 %748
    %750 = vrot.lane.b32.xlu0 %v725, 96
    %v751 = vpop.permute.xlu0 %750
    %v754 = vadd.f32 %v744, %v749
    %v755 = vadd.f32 %v745, %v751
    %v756 = vadd.f32 %v754, %v746
    %v757 = vadd.f32 %v755, %v747
    %v758 = vld [vmem:[%s9] sm:$0x1]
    %v760 = vlaneseq
    %v761 = vshrl.u32 %v760, 7
    %v762 = vsub.s32 0, %v761
    %v763 = vrot.slane %v758, %v762
    %v765 = vadd.f32 %v756, %v763
    %v766 = vadd.f32 %v757, %v763
    %v767 = vmax.f32 %v765, 0.0
    %v768 = vmax.f32 %v766, 0.0
    %v769 = vsel %vm294, %v767, 0.0
    %v770 = vrot.slane %v769, 4
    %v771 = vadd.f32 %v769, %v770
    %v772 = vrot.slane %v771, 2
    %v773 = vadd.f32 %v771, %v772
    %v774 = vrot.slane %v773, 1
    %v775 = vadd.f32 %v773, %v774
    %v776 = vsel %vm294, %v768, 0.0
    %v777 = vrot.slane %v776, 4
    %v778 = vadd.f32 %v776, %v777
    %v779 = vrot.slane %v778, 2
    %v780 = vadd.f32 %v778, %v779
    %v781 = vrot.slane %v780, 1
    %v782 = vadd.f32 %v780, %v781
    %v783 = vld [vmem:[%s10] sm:$0xff]
    %v784 = vld [vmem:[%s10 + $0x8] sm:$0xff]
    %v785 = vld [vmem:[%s10 + $0x10] sm:$0xff]
    %v786 = vld [vmem:[%s10 + $0x18] sm:$0xff]
    %v787 = vld [vmem:[%s11] sm:$0xff]
    %v788 = vld [vmem:[%s11 + $0x8] sm:$0xff]
    %v789 = vld [vmem:[%s11 + $0x10] sm:$0xff]
    %v790 = vld [vmem:[%s11 + $0x18] sm:$0xff]
    %vm793 = vcmask 1041409
    %v794 = vsel %vm793, %v782, %v775
    %v795 = vsel %vm294, %v794, 0
    %797 = vmatprep.subr.mxu0 0.0
    %798 = vmatpush1.msra.mxu0 %v787
    %799 = vmatprep.subr.mxu0 0.0
    %800 = vmatpush1.msra.mxu0 %v788
    %801 = vmatprep.subr.mxu0 0.0
    %802 = vmatpush1.msra.mxu0 %v789
    %803 = vmatprep.subr.mxu0 0.0
    %804 = vmatpush1.msra.mxu0 %v790
    %805 = vmatprep.subr.mxu0 0.0
    %806 = vmatpush1.msra.mxu0 0.0
    %807 = vmatprep.subr.mxu0 0.0
    %808 = vmatpush1.msra.mxu0 0.0
    %809 = vmatprep.subr.mxu0 0.0
    %810 = vmatpush1.msra.mxu0 0.0
    %811 = vmatprep.subr.mxu0 0.0
    %812 = vmatpush1.msra.mxu0 0.0
    %813 = vmatprep.subr.mxu0 0.0
    %814 = vmatpush1.msra.mxu0 0.0
    %815 = vmatprep.subr.mxu0 0.0
    %816 = vmatpush1.msra.mxu0 0.0
    %817 = vmatprep.subr.mxu0 0.0
    %818 = vmatpush1.msra.mxu0 0.0
    %819 = vmatprep.subr.mxu0 0.0
    %820 = vmatpush1.msra.mxu0 0.0
    %821 = vmatprep.subr.mxu0 0.0
    %822 = vmatpush1.msra.mxu0 0.0
    %823 = vmatprep.subr.mxu0 0.0
    %824 = vmatpush1.msra.mxu0 0.0
    %825 = vmatprep.subr.mxu0 0.0
    %826 = vmatpush1.msra.mxu0 0.0
    %827 = vmatprep.subr.mxu0 0.0
    %828 = vmatpush1.msra.mxu0 0.0
    %829 = vmatprep.subr.mxu0 0.0
    %830 = vmatpush1.msra.mxu0 0.0
    %831 = vmatprep.subr.mxu0 0.0
    %832 = vmatpush1.msra.mxu0 0.0
    %833 = vmatprep.subr.mxu0 0.0
    %834 = vmatpush1.msra.mxu0 0.0
    %835 = vmatprep.subr.mxu0 0.0
    %836 = vmatpush1.msra.mxu0 0.0
    %837 = vmatprep.subr.mxu0 0.0
    %838 = vmatpush1.msra.mxu0 0.0
    %839 = vmatprep.subr.mxu0 0.0
    %840 = vmatpush1.msra.mxu0 0.0
    %841 = vmatprep.subr.mxu0 0.0
    %842 = vmatpush1.msra.mxu0 0.0
    %843 = vmatprep.subr.mxu0 0.0
    %844 = vmatpush1.msra.mxu0 0.0
    %845 = vmatprep.subr.mxu0 0.0
    %846 = vmatpush1.msra.mxu0 0.0
    %847 = vmatprep.subr.mxu0 0.0
    %848 = vmatpush1.msra.mxu0 0.0
    %849 = vmatprep.subr.mxu0 0.0
    %850 = vmatpush1.msra.mxu0 0.0
    %851 = vmatprep.subr.mxu0 0.0
    %852 = vmatpush1.msra.mxu0 0.0
    %853 = vmatprep.subr.mxu0 0.0
    %854 = vmatpush1.msra.mxu0 0.0
    %855 = vmatprep.subr.mxu0 0.0
    %856 = vmatpush1.msra.mxu0 0.0
    %857 = vmatprep.subr.mxu0 0.0
    %858 = vmatpush1.msra.mxu0 0.0
    %859 = vmatprep.subr.mxu0 0.0
    %860 = vmatpush1.msra.mxu0 0.0
    %861 = vmatprep.mubr.f32.mxu0 0.0
    %862 = vmatmul.mubr.f32.gmra.mrb[0].mxu0 %v795
    %v863 = vpop.f32.mrb[0].mxu0
    %v864 = vadd.f32 0.0, %v863
    %v865 = vpop.f32.mrb[0].mxu0
    %866 = vdwg.mxu0
    %v869 = vsel %vm793, %v484, %v475
    %v870 = vsel %vm294, %v869, 0
    %872 = vmatprep.subr.mxu0 0.0
    %873 = vmatpush1.msra.mxu0 %v783
    %874 = vmatprep.subr.mxu0 0.0
    %875 = vmatpush1.msra.mxu0 %v784
    %876 = vmatprep.subr.mxu0 0.0
    %877 = vmatpush1.msra.mxu0 %v785
    %878 = vmatprep.subr.mxu0 0.0
    %879 = vmatpush1.msra.mxu0 %v786
    %880 = vmatprep.subr.mxu0 0.0
    %881 = vmatpush1.msra.mxu0 0.0
    %882 = vmatprep.subr.mxu0 0.0
    %883 = vmatpush1.msra.mxu0 0.0
    %884 = vmatprep.subr.mxu0 0.0
    %885 = vmatpush1.msra.mxu0 0.0
    %886 = vmatprep.subr.mxu0 0.0
    %887 = vmatpush1.msra.mxu0 0.0
    %888 = vmatprep.subr.mxu0 0.0
    %889 = vmatpush1.msra.mxu0 0.0
    %890 = vmatprep.subr.mxu0 0.0
    %891 = vmatpush1.msra.mxu0 0.0
    %892 = vmatprep.subr.mxu0 0.0
    %893 = vmatpush1.msra.mxu0 0.0
    %894 = vmatprep.subr.mxu0 0.0
    %895 = vmatpush1.msra.mxu0 0.0
    %896 = vmatprep.subr.mxu0 0.0
    %897 = vmatpush1.msra.mxu0 0.0
    %898 = vmatprep.subr.mxu0 0.0
    %899 = vmatpush1.msra.mxu0 0.0
    %900 = vmatprep.subr.mxu0 0.0
    %901 = vmatpush1.msra.mxu0 0.0
    %902 = vmatprep.subr.mxu0 0.0
    %903 = vmatpush1.msra.mxu0 0.0
    %904 = vmatprep.subr.mxu0 0.0
    %905 = vmatpush1.msra.mxu0 0.0
    %906 = vmatprep.subr.mxu0 0.0
    %907 = vmatpush1.msra.mxu0 0.0
    %908 = vmatprep.subr.mxu0 0.0
    %909 = vmatpush1.msra.mxu0 0.0
    %910 = vmatprep.subr.mxu0 0.0
    %911 = vmatpush1.msra.mxu0 0.0
    %912 = vmatprep.subr.mxu0 0.0
    %913 = vmatpush1.msra.mxu0 0.0
    %914 = vmatprep.subr.mxu0 0.0
    %915 = vmatpush1.msra.mxu0 0.0
    %916 = vmatprep.subr.mxu0 0.0
    %917 = vmatpush1.msra.mxu0 0.0
    %918 = vmatprep.subr.mxu0 0.0
    %919 = vmatpush1.msra.mxu0 0.0
    %920 = vmatprep.subr.mxu0 0.0
    %921 = vmatpush1.msra.mxu0 0.0
    %922 = vmatprep.subr.mxu0 0.0
    %923 = vmatpush1.msra.mxu0 0.0
    %924 = vmatprep.subr.mxu0 0.0
    %925 = vmatpush1.msra.mxu0 0.0
    %926 = vmatprep.subr.mxu0 0.0
    %927 = vmatpush1.msra.mxu0 0.0
    %928 = vmatprep.subr.mxu0 0.0
    %929 = vmatpush1.msra.mxu0 0.0
    %930 = vmatprep.subr.mxu0 0.0
    %931 = vmatpush1.msra.mxu0 0.0
    %932 = vmatprep.subr.mxu0 0.0
    %933 = vmatpush1.msra.mxu0 0.0
    %934 = vmatprep.subr.mxu0 0.0
    %935 = vmatpush1.msra.mxu0 0.0
    %936 = vmatprep.mubr.f32.mxu0 0.0
    %937 = vmatmul.mubr.f32.gmra.mrb[0].mxu0 %v870
    %v938 = vpop.f32.mrb[0].mxu0
    %v939 = vadd.f32 %v864, %v938
    %v940 = vpop.f32.mrb[0].mxu0
    %941 = vdwg.mxu0
    %v942 = vld [vmem:[%s12] sm:$0x1]
    %v944 = vlaneseq
    %v945 = vshrl.u32 %v944, 7
    %v946 = vsub.s32 0, %v945
    %v947 = vrot.slane %v942, %v946
    %v949 = vadd.f32 %v939, %v947
    %vm950 = vcmask 9216
    %951 = vst.msk [vmem:[#allocation2] sm:$0x3] %vm950, %v949
    // Predicated region
    $region54: #{tpu_custom_call.1} parent=1 // pred_check
      _
    $region55: #{tpu_custom_call.1} parent=1 // pred_check_branch
      %953 = sbr.rel (0) target = $region57
    $region56: #{tpu_custom_call.1} parent=1 // pred_region
      %s955 = ssub.s32 32, 32
      %956 = vsyncadd [#allocation3], %s955
      %s958 = sshll.u32 [#allocation2], 4
      %s959 = int_to_ptr.vmem [resolvable:$true] %s958
      %961 = dma.vmem_to_hbm [thread:$0]  %s959, 32, %s13, [#allocation3]
    $region57: #{tpu_custom_call.1} parent=1 // pred_fallthru
      _
    // Predicated region
    $region58: #{tpu_custom_call.1} parent=1 // pred_check
      _
    $region59: #{tpu_custom_call.1} parent=1 // pred_check_branch
      %963 = sbr.rel (0) target = $region61
    $region60: #{tpu_custom_call.1} parent=1 // pred_region
      %964 = dma.done [#allocation3], 32
    $region61: #{tpu_custom_call.1} parent=1 // pred_fallthru
      _
    %965 = vsyncpa [#allocation3], 1

</llo_original>
